<compile_context>
chip_gen: v5e
topology: v5e:2x2
jax: 0.10.0
libtpu: 0.0.40
codegen_flags: <defaults>
</compile_context>

<pallas_src>
import functools

import jax
import jax.numpy as jnp
from jax.experimental import pallas as pl
from jax.experimental.pallas import tpu as pltpu

LANE = 128  # TPU lane width


# ----------------------------- Pallas kernel -------------------------------

def _gsage_fused_kernel(x_ref, adj_ref, deg_inv_ref,
                        w1_ref, w2_ref, wl1_ref, wl2_ref,
                        biases_ref, o_ref):
    """Entire GSAGE forward in one kernel; intermediates never leave VMEM."""
    f32 = jnp.float32
    bf16 = jnp.bfloat16

    x = x_ref[...]              # (N, F)   bf16
    adj = adj_ref[...]          # (N, N)   bf16, binary {0, 1} (exact)
    deg_inv = deg_inv_ref[...]  # (N, 1)   f32  (1 / in-degree)
    biases = biases_ref[...]    # (8, 128) f32  (rows: b1, b2, bl1, bl2_pad)

    # ---- SAGEConv 1: relu([mean_neigh(x) | x] @ W1 + b1) ----
    agg1 = (jnp.dot(adj, x, preferred_element_type=f32) * deg_inv).astype(bf16)
    z1 = jnp.concatenate([agg1, x], axis=1)                        # (N, 2F) bf16
    h1 = jnp.dot(z1, w1_ref[...], preferred_element_type=f32)      # (N, H1) f32
    h1 = jnp.maximum(h1 + biases[0:1, :h1.shape[1]], 0.0).astype(bf16)

    # ---- SAGEConv 2: [mean_neigh(h1) | h1] @ W2 + b2 (no activation) ----
    agg2 = (jnp.dot(adj, h1, preferred_element_type=f32) * deg_inv).astype(bf16)
    z2 = jnp.concatenate([agg2, h1], axis=1)                       # (N, 2*H1) bf16
    h2 = jnp.dot(z2, w2_ref[...], preferred_element_type=f32)      # (N, H2) f32
    h2 = (h2 + biases[1:2, :h2.shape[1]]).astype(bf16)

    # ---- linear1 + relu  (dropout = identity in eval mode) ----
    # TODO(synk): dropout is identity with training=False; not implemented.
    h3 = jnp.dot(h2, wl1_ref[...], preferred_element_type=f32)     # (N, H3) f32
    h3 = jnp.maximum(h3 + biases[2:3, :h3.shape[1]], 0.0).astype(bf16)

    # ---- linear2 + relu; lane-dense padded output (N, 128), bf16 store ----
    y = jnp.dot(h3, wl2_ref[...], preferred_element_type=f32)      # (N, 128) f32
    y = jnp.maximum(y + biases[3:4, :y.shape[1]], 0.0)
    o_ref[...] = y.astype(o_ref.dtype)


def gsage_forward(x_bf16, adj_bf16, deg_inv, params, *, nb_classes):
    """Fused forward. Returns (N, nb_classes) float32."""
    N = x_bf16.shape[0]
    lane_pad = params["wl2_pad"].shape[1]
    vmem = pl.BlockSpec(memory_space=pltpu.MemorySpace.VMEM)

    args = (x_bf16, adj_bf16, deg_inv,
            params["w1"], params["w2"], params["wl1"], params["wl2_pad"],
            params["biases"])

    # Size the scoped-VMEM limit from the actual resident set (inputs + output,
    # double-buffer factor + headroom for compiler scratch), capped at v7x's
    # 64 MiB physical VMEM.
    resident = sum(int(a.size) * a.dtype.itemsize for a in args)
    resident += N * lane_pad * 2  # bf16 output
    vmem_limit = int(min(64 << 20, max(2 * resident + (4 << 20), 8 << 20)))

    y_padded = pl.pallas_call(
        _gsage_fused_kernel,
        out_shape=jax.ShapeDtypeStruct((N, lane_pad), jnp.bfloat16),
        in_specs=[vmem] * len(args),
        out_specs=vmem,
        compiler_params=pltpu.CompilerParams(vmem_limit_bytes=vmem_limit),
    )(*args)

    return y_padded[:, :nb_classes].astype(jnp.float32)


# ----------------------------- setup / params ------------------------------

def init_raw_params(key, nb_features, nb_hidden1, nb_hidden2, nb_hidden3,
                    nb_classes):
    """Weights in PyTorch layout (out_features, in_features)."""
    ks = jax.random.split(key, 8)

    def w(k, shape):
        fan_in = shape[-1]
        return (jax.random.uniform(k, shape, jnp.float32, -1.0, 1.0)
                / jnp.sqrt(jnp.float32(fan_in)))

    return {
        # SAGEConv 1: lin_l (neighbor agg, has bias), lin_r (root, no bias)
        "w1_l": w(ks[0], (nb_hidden1, nb_features)),
        "w1_r": w(ks[1], (nb_hidden1, nb_features)),
        "b1":   jnp.zeros((nb_hidden1,), jnp.float32),
        # SAGEConv 2
        "w2_l": w(ks[2], (nb_hidden2, nb_hidden1)),
        "w2_r": w(ks[3], (nb_hidden2, nb_hidden1)),
        "b2":   jnp.zeros((nb_hidden2,), jnp.float32),
        # Linear heads
        "wl1":  w(ks[4], (nb_hidden3, nb_hidden2)),
        "bl1":  w(ks[5], (nb_hidden3,)),
        "wl2":  w(ks[6], (nb_classes, nb_hidden3)),
        "bl2":  w(ks[7], (nb_classes,)),
    }


def prepare_params(raw, nb_classes):
    """One-time hoisted preprocessing:
      * stack each SAGEConv's (lin_l, lin_r) transposed weights into one
        (2*in, out) bf16 matrix (so the kernel does one dot per layer),
      * pack all biases into a single lane-dense (8, 128) f32 block,
      * pad the final head to lane-dense 128 output columns."""
    bf16 = jnp.bfloat16
    H1 = raw["b1"].shape[0]
    H2 = raw["b2"].shape[0]
    H3 = raw["bl1"].shape[0]
    assert max(H1, H2, H3) <= LANE, "bias packing assumes hidden dims <= 128"
    lane_pad = pl.cdiv(nb_classes, LANE) * LANE

    # [agg | x] @ [W_l^T ; W_r^T]  ==  agg @ W_l^T + x @ W_r^T
    w1 = jnp.concatenate([raw["w1_l"].T, raw["w1_r"].T], axis=0).astype(bf16)
    w2 = jnp.concatenate([raw["w2_l"].T, raw["w2_r"].T], axis=0).astype(bf16)
    wl1 = raw["wl1"].T.astype(bf16)                              # (H2, H3)

    wl2T = raw["wl2"].T                                          # (H3, C)
    wl2_pad = jnp.zeros((wl2T.shape[0], lane_pad), bf16)
    wl2_pad = wl2_pad.at[:, :nb_classes].set(wl2T.astype(bf16))  # (H3, 128)

    biases = jnp.zeros((8, LANE), jnp.float32)
    biases = biases.at[0, :H1].set(raw["b1"])
    biases = biases.at[1, :H2].set(raw["b2"])
    biases = biases.at[2, :H3].set(raw["bl1"])
    biases = biases.at[3, :nb_classes].set(raw["bl2"])

    return {
        "w1": w1,            # (2F,  H1) bf16
        "w2": w2,            # (2H1, H2) bf16
        "wl1": wl1,          # (H2,  H3) bf16
        "wl2_pad": wl2_pad,  # (H3, 128) bf16
        "biases": biases,    # (8,  128) f32
    }


def build_graph(key, num_nodes, num_edges):
    """Binary adjacency (A[i, j] = 1 for edge j -> i) + f32 inverse degrees."""
    k1, k2 = jax.random.split(key)
    src = jax.random.randint(k1, (num_edges,), 0, num_nodes)
    dst = jax.random.randint(k2, (num_edges,), 0, num_nodes)
    # dataset loader inserts both directions of each edge
    srcs = jnp.concatenate([src, dst])
    dsts = jnp.concatenate([dst, src])
    adj = jnp.zeros((num_nodes, num_nodes), jnp.float32)
    adj = adj.at[dsts, srcs].set(1.0)           # binary: exact in bf16
    deg = adj.sum(axis=1, keepdims=True)
    deg_inv = 1.0 / jnp.maximum(deg, 1.0)       # (N, 1) f32, applied in-kernel
    return adj, deg_inv


def gsage_reference(x_bf16, adj_bf16, deg_inv, raw, nb_classes):
    """Pure-JAX reference mirroring the kernel's precision path."""
    f32, bf16 = jnp.float32, jnp.bfloat16

    def mm(a, b):
        return jnp.dot(a, b, preferred_element_type=f32)

    x, adj = x_bf16, adj_bf16
    agg1 = (mm(adj, x) * deg_inv).astype(bf16)
    h1 = (mm(agg1, raw["w1_l"].T.astype(bf16))
          + mm(x, raw["w1_r"].T.astype(bf16)) + raw["b1"])
    h1 = jnp.maximum(h1, 0.0).astype(bf16)
    agg2 = (mm(adj, h1) * deg_inv).astype(bf16)
    h2 = (mm(agg2, raw["w2_l"].T.astype(bf16))
          + mm(h1, raw["w2_r"].T.astype(bf16)) + raw["b2"]).astype(bf16)
    h3 = jnp.maximum(mm(h2, raw["wl1"].T.astype(bf16)) + raw["bl1"], 0.0)
    h3 = h3.astype(bf16)
    y = jnp.maximum(mm(h3, raw["wl2"].T.astype(bf16)) + raw["bl2"], 0.0)
    return y[:, :nb_classes].astype(f32)


# ----------------------------------- main -----------------------------------

if __name__ == "__main__":
    N = 128             # number of graph nodes
    NB_FEATURES = 32
    NB_HIDDEN1 = 64
    NB_HIDDEN2 = 64
    NB_HIDDEN3 = 64
    NB_CLASSES = 1
    NUM_EDGES = 512

    key = jax.random.PRNGKey(0)
    k_x, k_adj, k_p = jax.random.split(key, 3)

    x = jax.random.normal(k_x, (N, NB_FEATURES), jnp.float32)
    adj, deg_inv = build_graph(k_adj, N, NUM_EDGES)

    # One-time preprocessing hoisted out of the hot path.
    x_bf16 = x.astype(jnp.bfloat16)
    adj_bf16 = adj.astype(jnp.bfloat16)       # binary 0/1 -> exact in bf16
    raw = init_raw_params(k_p, NB_FEATURES, NB_HIDDEN1, NB_HIDDEN2,
                          NB_HIDDEN3, NB_CLASSES)
    params = jax.tree_util.tree_map(
        jax.block_until_ready, prepare_params(raw, NB_CLASSES))

    fwd = jax.jit(functools.partial(gsage_forward, nb_classes=NB_CLASSES))
    out = jax.block_until_ready(fwd(x_bf16, adj_bf16, deg_inv, params))

    assert out.shape == (N, NB_CLASSES)
    assert out.dtype == jnp.float32
    assert bool(jnp.all(out >= 0.0))          # final ReLU
    assert bool(jnp.all(jnp.isfinite(out)))

    # Correctness vs. a pure-JAX reference with the same precision path
    # (loose tolerance: kernel output round-trips through bf16 in HBM).
    ref = jax.block_until_ready(
        gsage_reference(x_bf16, adj_bf16, deg_inv, raw, NB_CLASSES))
    max_err = float(jnp.max(jnp.abs(out - ref)))
    tol = 2e-2 + 2e-2 * float(jnp.max(jnp.abs(ref)))
    assert max_err < tol, f"mismatch vs reference: {max_err} (tol {tol})"

    print("KERNEL_OK")
</pallas_src>

<mosaic_0001>
module attributes {stable_mosaic.version = 11 : i64} {
  func.func @_gsage_fused_kernel(%arg0: memref<128x32xbf16, #tpu.memory_space<vmem>>, %arg1: memref<128x128xbf16, #tpu.memory_space<vmem>>, %arg2: memref<128x1xf32, #tpu.memory_space<vmem>>, %arg3: memref<64x64xbf16, #tpu.memory_space<vmem>>, %arg4: memref<128x64xbf16, #tpu.memory_space<vmem>>, %arg5: memref<64x64xbf16, #tpu.memory_space<vmem>>, %arg6: memref<64x128xbf16, #tpu.memory_space<vmem>>, %arg7: memref<8x128xf32, #tpu.memory_space<vmem>>, %arg8: memref<128x128xbf16, #tpu.memory_space<vmem>>) attributes {dimension_semantics = [], scalar_prefetch = 0 : i64, scratch_operands = 0 : i64, tpu.core_type = #tpu.core_type<tc>} {
    %c0 = arith.constant 0 : index
    %c0_0 = arith.constant 0 : index
    %0 = vector.load %arg0[%c0, %c0_0] : memref<128x32xbf16, #tpu.memory_space<vmem>>, vector<128x32xbf16>
    %c0_1 = arith.constant 0 : index
    %c0_2 = arith.constant 0 : index
    %1 = vector.load %arg1[%c0_1, %c0_2] : memref<128x128xbf16, #tpu.memory_space<vmem>>, vector<128x128xbf16>
    %c0_3 = arith.constant 0 : index
    %c0_4 = arith.constant 0 : index
    %2 = vector.load %arg2[%c0_3, %c0_4] : memref<128x1xf32, #tpu.memory_space<vmem>>, vector<128x1xf32>
    %c0_5 = arith.constant 0 : index
    %c0_6 = arith.constant 0 : index
    %3 = vector.load %arg7[%c0_5, %c0_6] : memref<8x128xf32, #tpu.memory_space<vmem>>, vector<8x128xf32>
    %cst = arith.constant dense<0.000000e+00> : vector<128x32xf32>
    %4 = tpu.matmul %1, %0, %cst {dimension_numbers = #tpu.dot_dimension_numbers<[1], [0], [0], [1], [0, 0, 1, 1], [], []>} : vector<128x128xbf16>, vector<128x32xbf16>, vector<128x32xf32> -> vector<128x32xf32>
    %5 = vector.broadcast %2 : vector<128x1xf32> to vector<128x32xf32>
    %6 = arith.mulf %4, %5 : vector<128x32xf32>
    %7 = arith.truncf %6 : vector<128x32xf32> to vector<128x32xbf16>
    %8 = tpu.concatenate %7, %0 in 1 : vector<128x32xbf16>, vector<128x32xbf16> -> vector<128x64xbf16>
    %c0_7 = arith.constant 0 : index
    %c0_8 = arith.constant 0 : index
    %9 = vector.load %arg3[%c0_7, %c0_8] : memref<64x64xbf16, #tpu.memory_space<vmem>>, vector<64x64xbf16>
    %cst_9 = arith.constant dense<0.000000e+00> : vector<128x64xf32>
    %10 = tpu.matmul %8, %9, %cst_9 {dimension_numbers = #tpu.dot_dimension_numbers<[1], [0], [0], [1], [0, 0, 1, 1], [], []>} : vector<128x64xbf16>, vector<64x64xbf16>, vector<128x64xf32> -> vector<128x64xf32>
    %11 = vector.extract_strided_slice %3 {offsets = [0, 0], sizes = [1, 64], strides = [1, 1]} : vector<8x128xf32> to vector<1x64xf32>
    %12 = vector.broadcast %11 : vector<1x64xf32> to vector<128x64xf32>
    %13 = arith.addf %10, %12 : vector<128x64xf32>
    %cst_10 = arith.constant 0.000000e+00 : f32
    %14 = vector.broadcast %cst_10 : f32 to vector<128x64xf32>
    %15 = arith.maximumf %13, %14 : vector<128x64xf32>
    %16 = arith.truncf %15 : vector<128x64xf32> to vector<128x64xbf16>
    %cst_11 = arith.constant dense<0.000000e+00> : vector<128x64xf32>
    %17 = tpu.matmul %1, %16, %cst_11 {dimension_numbers = #tpu.dot_dimension_numbers<[1], [0], [0], [1], [0, 0, 1, 1], [], []>} : vector<128x128xbf16>, vector<128x64xbf16>, vector<128x64xf32> -> vector<128x64xf32>
    %18 = vector.broadcast %2 : vector<128x1xf32> to vector<128x64xf32>
    %19 = arith.mulf %17, %18 : vector<128x64xf32>
    %20 = arith.truncf %19 : vector<128x64xf32> to vector<128x64xbf16>
    %21 = tpu.concatenate %20, %16 in 1 : vector<128x64xbf16>, vector<128x64xbf16> -> vector<128x128xbf16>
    %c0_12 = arith.constant 0 : index
    %c0_13 = arith.constant 0 : index
    %22 = vector.load %arg4[%c0_12, %c0_13] : memref<128x64xbf16, #tpu.memory_space<vmem>>, vector<128x64xbf16>
    %cst_14 = arith.constant dense<0.000000e+00> : vector<128x64xf32>
    %23 = tpu.matmul %21, %22, %cst_14 {dimension_numbers = #tpu.dot_dimension_numbers<[1], [0], [0], [1], [0, 0, 1, 1], [], []>} : vector<128x128xbf16>, vector<128x64xbf16>, vector<128x64xf32> -> vector<128x64xf32>
    %24 = vector.extract_strided_slice %3 {offsets = [1, 0], sizes = [1, 64], strides = [1, 1]} : vector<8x128xf32> to vector<1x64xf32>
    %25 = vector.broadcast %24 : vector<1x64xf32> to vector<128x64xf32>
    %26 = arith.addf %23, %25 : vector<128x64xf32>
    %27 = arith.truncf %26 : vector<128x64xf32> to vector<128x64xbf16>
    %c0_15 = arith.constant 0 : index
    %c0_16 = arith.constant 0 : index
    %28 = vector.load %arg5[%c0_15, %c0_16] : memref<64x64xbf16, #tpu.memory_space<vmem>>, vector<64x64xbf16>
    %cst_17 = arith.constant dense<0.000000e+00> : vector<128x64xf32>
    %29 = tpu.matmul %27, %28, %cst_17 {dimension_numbers = #tpu.dot_dimension_numbers<[1], [0], [0], [1], [0, 0, 1, 1], [], []>} : vector<128x64xbf16>, vector<64x64xbf16>, vector<128x64xf32> -> vector<128x64xf32>
    %30 = vector.extract_strided_slice %3 {offsets = [2, 0], sizes = [1, 64], strides = [1, 1]} : vector<8x128xf32> to vector<1x64xf32>
    %31 = vector.broadcast %30 : vector<1x64xf32> to vector<128x64xf32>
    %32 = arith.addf %29, %31 : vector<128x64xf32>
    %cst_18 = arith.constant 0.000000e+00 : f32
    %33 = vector.broadcast %cst_18 : f32 to vector<128x64xf32>
    %34 = arith.maximumf %32, %33 : vector<128x64xf32>
    %35 = arith.truncf %34 : vector<128x64xf32> to vector<128x64xbf16>
    %c0_19 = arith.constant 0 : index
    %c0_20 = arith.constant 0 : index
    %36 = vector.load %arg6[%c0_19, %c0_20] : memref<64x128xbf16, #tpu.memory_space<vmem>>, vector<64x128xbf16>
    %cst_21 = arith.constant dense<0.000000e+00> : vector<128x128xf32>
    %37 = tpu.matmul %35, %36, %cst_21 {dimension_numbers = #tpu.dot_dimension_numbers<[1], [0], [0], [1], [0, 0, 1, 1], [], []>} : vector<128x64xbf16>, vector<64x128xbf16>, vector<128x128xf32> -> vector<128x128xf32>
    %38 = vector.extract_strided_slice %3 {offsets = [3, 0], sizes = [1, 128], strides = [1, 1]} : vector<8x128xf32> to vector<1x128xf32>
    %39 = vector.broadcast %38 : vector<1x128xf32> to vector<128x128xf32>
    %40 = arith.addf %37, %39 : vector<128x128xf32>
    %cst_22 = arith.constant 0.000000e+00 : f32
    %41 = vector.broadcast %cst_22 : f32 to vector<128x128xf32>
    %42 = arith.maximumf %40, %41 : vector<128x128xf32>
    %43 = arith.truncf %42 : vector<128x128xf32> to vector<128x128xbf16>
    %c0_23 = arith.constant 0 : index
    %c0_24 = arith.constant 0 : index
    %44 = vector.load %arg8[%c0_23, %c0_24] : memref<128x128xbf16, #tpu.memory_space<vmem>>, vector<128x128xbf16>
    tpu.vector_store %arg8[%c0_23, %c0_24], %43 {strides = array<i32>} : memref<128x128xbf16, #tpu.memory_space<vmem>>, vector<128x128xbf16>,
    return
  }
}

</mosaic_0001>

<llo_original>
// kernel: gsage_forward.1
$region0: #{gsage_forward.1}
  #allocation0 [shape = 'u32[]', space=smem, size = 0x4, offset = 0x4, fixed_abs, tag = 'smem constant byte address 0x4 - core index']
  #allocation1 [shape = 'u32[72,128]{1,0:T(1,128)}', space=vmem, size = 0x9000, scoped, tag = 'internal scratch']
  %s0 = inlined_call_operand.vmem [shape: bf16[128,32], index: 0, kind: input, shape index: {}]
  %s1 = inlined_call_operand.vmem [shape: bf16[128,128], index: 1, kind: input, shape index: {}]
  %s2 = inlined_call_operand.vmem [shape: f32[128,1], index: 2, kind: input, shape index: {}]
  %s3 = inlined_call_operand.vmem [shape: bf16[64,64], index: 3, kind: input, shape index: {}]
  %s4 = inlined_call_operand.vmem [shape: bf16[128,64], index: 4, kind: input, shape index: {}]
  %s5 = inlined_call_operand.vmem [shape: bf16[64,64], index: 5, kind: input, shape index: {}]
  %s6 = inlined_call_operand.vmem [shape: bf16[64,128], index: 6, kind: input, shape index: {}]
  %s7 = inlined_call_operand.vmem [shape: f32[8,128], index: 7, kind: input, shape index: {}]
  %s8 = inlined_call_operand.vmem [shape: bf16[128,128], index: 8, kind: output, shape index: {}]
  %s9 = sld [smem:[#allocation0]]
  $region42: #{gsage_forward.1} parent=0
    _
  %s11 = ssub.s32 1, %s9
  %s12 = scalar_select 0, %s11, %s9
  // Predicated region
  $region2: #{gsage_forward.1} parent=0 // pred_check
    _
  $region3: #{gsage_forward.1} parent=0 // pred_check_branch
    %14 = sbr.rel (0) target = $region5
  $region4: #{gsage_forward.1} parent=0 // pred_region
    _
  $region5: #{gsage_forward.1} parent=0 // pred_fallthru
    _
  // Predicated region
  $region6: #{gsage_forward.1} parent=0 // pred_check
    _
  $region7: #{gsage_forward.1} parent=0 // pred_check_branch
    %16 = sbr.rel (0) target = $region9
  $region8: #{gsage_forward.1} parent=0 // pred_region
    _
  $region9: #{gsage_forward.1} parent=0 // pred_fallthru
    _
  // Predicated region
  $region10: #{gsage_forward.1} parent=0 // pred_check
    _
  $region11: #{gsage_forward.1} parent=0 // pred_check_branch
    %18 = sbr.rel (0) target = $region13
  $region12: #{gsage_forward.1} parent=0 // pred_region
    _
  $region13: #{gsage_forward.1} parent=0 // pred_fallthru
    _
  // Predicated region
  $region14: #{gsage_forward.1} parent=0 // pred_check
    _
  $region15: #{gsage_forward.1} parent=0 // pred_check_branch
    %20 = sbr.rel (0) target = $region17
  $region16: #{gsage_forward.1} parent=0 // pred_region
    _
  $region17: #{gsage_forward.1} parent=0 // pred_fallthru
    _
  // Predicated region
  $region18: #{gsage_forward.1} parent=0 // pred_check
    _
  $region19: #{gsage_forward.1} parent=0 // pred_check_branch
    %22 = sbr.rel (0) target = $region21
  $region20: #{gsage_forward.1} parent=0 // pred_region
    _
  $region21: #{gsage_forward.1} parent=0 // pred_fallthru
    _
  // Predicated region
  $region22: #{gsage_forward.1} parent=0 // pred_check
    _
  $region23: #{gsage_forward.1} parent=0 // pred_check_branch
    %24 = sbr.rel (0) target = $region25
  $region24: #{gsage_forward.1} parent=0 // pred_region
    _
  $region25: #{gsage_forward.1} parent=0 // pred_fallthru
    _
  // Predicated region
  $region26: #{gsage_forward.1} parent=0 // pred_check
    _
  $region27: #{gsage_forward.1} parent=0 // pred_check_branch
    %26 = sbr.rel (0) target = $region29
  $region28: #{gsage_forward.1} parent=0 // pred_region
    _
  $region29: #{gsage_forward.1} parent=0 // pred_fallthru
    _
  // Predicated region
  $region30: #{gsage_forward.1} parent=0 // pred_check
    _
  $region31: #{gsage_forward.1} parent=0 // pred_check_branch
    %28 = sbr.rel (0) target = $region33
  $region32: #{gsage_forward.1} parent=0 // pred_region
    _
  $region33: #{gsage_forward.1} parent=0 // pred_fallthru
    _
  %v30 = vld [vmem:[%s0] sm:$0xf]
  %v31 = vld [vmem:[%s0 + $0x4] sm:$0xf]
  %v32 = vld [vmem:[%s0 + $0x8] sm:$0xf]
  %v33 = vld [vmem:[%s0 + $0xc] sm:$0xf]
  %v34 = vld [vmem:[%s0 + $0x10] sm:$0xf]
  %v35 = vld [vmem:[%s0 + $0x14] sm:$0xf]
  %v36 = vld [vmem:[%s0 + $0x18] sm:$0xf]
  %v37 = vld [vmem:[%s0 + $0x1c] sm:$0xf]
  %v38 = vld [vmem:[%s0 + $0x20] sm:$0xf]
  %v39 = vld [vmem:[%s0 + $0x24] sm:$0xf]
  %v40 = vld [vmem:[%s0 + $0x28] sm:$0xf]
  %v41 = vld [vmem:[%s0 + $0x2c] sm:$0xf]
  %v42 = vld [vmem:[%s0 + $0x30] sm:$0xf]
  %v43 = vld [vmem:[%s0 + $0x34] sm:$0xf]
  %v44 = vld [vmem:[%s0 + $0x38] sm:$0xf]
  %v45 = vld [vmem:[%s0 + $0x3c] sm:$0xf]
  %v46 = vld [vmem:[%s1] sm:$0xf]
  %v47 = vld [vmem:[%s1 + $0x4] sm:$0xf]
  %v48 = vld [vmem:[%s1 + $0x8] sm:$0xf]
  %v49 = vld [vmem:[%s1 + $0xc] sm:$0xf]
  %v50 = vld [vmem:[%s1 + $0x10] sm:$0xf]
  %v51 = vld [vmem:[%s1 + $0x14] sm:$0xf]
  %v52 = vld [vmem:[%s1 + $0x18] sm:$0xf]
  %v53 = vld [vmem:[%s1 + $0x1c] sm:$0xf]
  %v54 = vld [vmem:[%s1 + $0x20] sm:$0xf]
  %v55 = vld [vmem:[%s1 + $0x24] sm:$0xf]
  %v56 = vld [vmem:[%s1 + $0x28] sm:$0xf]
  %v57 = vld [vmem:[%s1 + $0x2c] sm:$0xf]
  %v58 = vld [vmem:[%s1 + $0x30] sm:$0xf]
  %v59 = vld [vmem:[%s1 + $0x34] sm:$0xf]
  %v60 = vld [vmem:[%s1 + $0x38] sm:$0xf]
  %v61 = vld [vmem:[%s1 + $0x3c] sm:$0xf]
  %v62 = vld [vmem:[%s2] sm:$0xff]
  %v63 = vld [vmem:[%s2 + $0x8] sm:$0xff]
  %v64 = vld [vmem:[%s2 + $0x10] sm:$0xff]
  %v65 = vld [vmem:[%s2 + $0x18] sm:$0xff]
  %v66 = vld [vmem:[%s2 + $0x20] sm:$0xff]
  %v67 = vld [vmem:[%s2 + $0x28] sm:$0xff]
  %v68 = vld [vmem:[%s2 + $0x30] sm:$0xff]
  %v69 = vld [vmem:[%s2 + $0x38] sm:$0xff]
  %v70 = vld [vmem:[%s2 + $0x40] sm:$0xff]
  %v71 = vld [vmem:[%s2 + $0x48] sm:$0xff]
  %v72 = vld [vmem:[%s2 + $0x50] sm:$0xff]
  %v73 = vld [vmem:[%s2 + $0x58] sm:$0xff]
  %v74 = vld [vmem:[%s2 + $0x60] sm:$0xff]
  %v75 = vld [vmem:[%s2 + $0x68] sm:$0xff]
  %v76 = vld [vmem:[%s2 + $0x70] sm:$0xff]
  %v77 = vld [vmem:[%s2 + $0x78] sm:$0xff]
  %v78 = vld [vmem:[%s7] sm:$0xff]
  %v95 = vunpack.c.l.b16 %v46
  %v96 = vunpack.c.l.b16 %v47
  %v97 = vunpack.c.l.b16 %v48
  %v98 = vunpack.c.l.b16 %v49
  %v99 = vunpack.c.l.b16 %v50
  %v100 = vunpack.c.l.b16 %v51
  %v101 = vunpack.c.l.b16 %v52
  %v102 = vunpack.c.l.b16 %v53
  %v103 = vunpack.c.l.b16 %v54
  %v104 = vunpack.c.l.b16 %v55
  %v105 = vunpack.c.l.b16 %v56
  %v106 = vunpack.c.l.b16 %v57
  %v107 = vunpack.c.l.b16 %v58
  %v108 = vunpack.c.l.b16 %v59
  %v109 = vunpack.c.l.b16 %v60
  %v110 = vunpack.c.l.b16 %v61
  %v111 = vpack.c.b16 %v96, %v95
  %v112 = vpack.c.b16 %v98, %v97
  %v113 = vpack.c.b16 %v100, %v99
  %v114 = vpack.c.b16 %v102, %v101
  %v115 = vpack.c.b16 %v104, %v103
  %v116 = vpack.c.b16 %v106, %v105
  %v117 = vpack.c.b16 %v108, %v107
  %v118 = vpack.c.b16 %v110, %v109
  %v143 = vunpack.c.l.b16 %v30
  %v144 = vunpack.c.l.b16 %v31
  %v145 = vunpack.c.l.b16 %v32
  %v146 = vunpack.c.l.b16 %v33
  %v147 = vunpack.c.l.b16 %v34
  %v148 = vunpack.c.l.b16 %v35
  %v149 = vunpack.c.l.b16 %v36
  %v150 = vunpack.c.l.b16 %v37
  %v151 = vunpack.c.l.b16 %v38
  %v152 = vunpack.c.l.b16 %v39
  %v153 = vunpack.c.l.b16 %v40
  %v154 = vunpack.c.l.b16 %v41
  %v155 = vunpack.c.l.b16 %v42
  %v156 = vunpack.c.l.b16 %v43
  %v157 = vunpack.c.l.b16 %v44
  %v158 = vunpack.c.l.b16 %v45
  %v159 = vpack.c.b16 %v144, %v143
  %v160 = vpack.c.b16 %v146, %v145
  %v161 = vpack.c.b16 %v148, %v147
  %v162 = vpack.c.b16 %v150, %v149
  %v163 = vpack.c.b16 %v152, %v151
  %v164 = vpack.c.b16 %v154, %v153
  %v165 = vpack.c.b16 %v156, %v155
  %v166 = vpack.c.b16 %v158, %v157
  %175 = vmatpush.bf16.msra.mxu0 %v166
  %176 = vmatpush.bf16.msra.mxu0 %v165
  %177 = vmatpush.bf16.msra.mxu0 %v164
  %178 = vmatpush.bf16.msra.mxu0 %v163
  %179 = vmatpush.bf16.msra.mxu0 %v162
  %180 = vmatpush.bf16.msra.mxu0 %v161
  %181 = vmatpush.bf16.msra.mxu0 %v160
  %182 = vmatpush.bf16.msra.mxu0 %v159
  %183 = vmatmul.bf16.gmra.mxu0 %v111
  %v184 = vpop.f32.mrf.mxu0
  %v185 = vadd.f32 0.0, %v184
  %v186 = vpop.f32.mrf.mxu0
  %v187 = vadd.f32 0.0, %v186
  %188 = vmatmul.bf16.gmra.mxu0 %v112
  %v189 = vpop.f32.mrf.mxu0
  %v190 = vadd.f32 0.0, %v189
  %v191 = vpop.f32.mrf.mxu0
  %v192 = vadd.f32 0.0, %v191
  %193 = vmatmul.bf16.gmra.mxu0 %v113
  %v194 = vpop.f32.mrf.mxu0
  %v195 = vadd.f32 0.0, %v194
  %v196 = vpop.f32.mrf.mxu0
  %v197 = vadd.f32 0.0, %v196
  %198 = vmatmul.bf16.gmra.mxu0 %v114
  %v199 = vpop.f32.mrf.mxu0
  %v200 = vadd.f32 0.0, %v199
  %v201 = vpop.f32.mrf.mxu0
  %v202 = vadd.f32 0.0, %v201
  %203 = vmatmul.bf16.gmra.mxu0 %v115
  %v204 = vpop.f32.mrf.mxu0
  %v205 = vadd.f32 0.0, %v204
  %v206 = vpop.f32.mrf.mxu0
  %v207 = vadd.f32 0.0, %v206
  %208 = vmatmul.bf16.gmra.mxu0 %v116
  %v209 = vpop.f32.mrf.mxu0
  %v210 = vadd.f32 0.0, %v209
  %v211 = vpop.f32.mrf.mxu0
  %v212 = vadd.f32 0.0, %v211
  %213 = vmatmul.bf16.gmra.mxu0 %v117
  %v214 = vpop.f32.mrf.mxu0
  %v215 = vadd.f32 0.0, %v214
  %v216 = vpop.f32.mrf.mxu0
  %v217 = vadd.f32 0.0, %v216
  %218 = vmatmul.bf16.gmra.mxu0 %v118
  %v219 = vpop.f32.mrf.mxu0
  %v220 = vadd.f32 0.0, %v219
  %v221 = vpop.f32.mrf.mxu0
  %v222 = vadd.f32 0.0, %v221
  %223 = vdwg.mxu0
  %225 = vset.pattern.permute.xlu0 0
  %226 = vperm.xlu0 %225, %v62
  %v227 = vpop.permute.xlu0 %226
  %230 = vset.pattern.permute.xlu0 0
  %231 = vperm.xlu0 %230, %v63
  %v232 = vpop.permute.xlu0 %231
  %235 = vset.pattern.permute.xlu0 0
  %236 = vperm.xlu0 %235, %v64
  %v237 = vpop.permute.xlu0 %236
  %240 = vset.pattern.permute.xlu0 0
  %241 = vperm.xlu0 %240, %v65
  %v242 = vpop.permute.xlu0 %241
  %245 = vset.pattern.permute.xlu0 0
  %246 = vperm.xlu0 %245, %v66
  %v247 = vpop.permute.xlu0 %246
  %250 = vset.pattern.permute.xlu0 0
  %251 = vperm.xlu0 %250, %v67
  %v252 = vpop.permute.xlu0 %251
  %255 = vset.pattern.permute.xlu0 0
  %256 = vperm.xlu0 %255, %v68
  %v257 = vpop.permute.xlu0 %256
  %260 = vset.pattern.permute.xlu0 0
  %261 = vperm.xlu0 %260, %v69
  %v262 = vpop.permute.xlu0 %261
  %265 = vset.pattern.permute.xlu0 0
  %266 = vperm.xlu0 %265, %v70
  %v267 = vpop.permute.xlu0 %266
  %270 = vset.pattern.permute.xlu0 0
  %271 = vperm.xlu0 %270, %v71
  %v272 = vpop.permute.xlu0 %271
  %275 = vset.pattern.permute.xlu0 0
  %276 = vperm.xlu0 %275, %v72
  %v277 = vpop.permute.xlu0 %276
  %280 = vset.pattern.permute.xlu0 0
  %281 = vperm.xlu0 %280, %v73
  %v282 = vpop.permute.xlu0 %281
  %285 = vset.pattern.permute.xlu0 0
  %286 = vperm.xlu0 %285, %v74
  %v287 = vpop.permute.xlu0 %286
  %290 = vset.pattern.permute.xlu0 0
  %291 = vperm.xlu0 %290, %v75
  %v292 = vpop.permute.xlu0 %291
  %295 = vset.pattern.permute.xlu0 0
  %296 = vperm.xlu0 %295, %v76
  %v297 = vpop.permute.xlu0 %296
  %300 = vset.pattern.permute.xlu0 0
  %301 = vperm.xlu0 %300, %v77
  %v302 = vpop.permute.xlu0 %301
  %v304 = vmul.f32 %v185, %v227
  %v305 = vmul.f32 %v187, %v232
  %v306 = vmul.f32 %v190, %v237
  %v307 = vmul.f32 %v192, %v242
  %v308 = vmul.f32 %v195, %v247
  %v309 = vmul.f32 %v197, %v252
  %v310 = vmul.f32 %v200, %v257
  %v311 = vmul.f32 %v202, %v262
  %v312 = vmul.f32 %v205, %v267
  %v313 = vmul.f32 %v207, %v272
  %v314 = vmul.f32 %v210, %v277
  %v315 = vmul.f32 %v212, %v282
  %v316 = vmul.f32 %v215, %v287
  %v317 = vmul.f32 %v217, %v292
  %v318 = vmul.f32 %v220, %v297
  %v319 = vmul.f32 %v222, %v302
  %v320 = vpack.c.bf16 %v304, %v304
  %v321 = vpack.c.bf16 %v305, %v305
  %v322 = vpack.c.bf16 %v306, %v306
  %v323 = vpack.c.bf16 %v307, %v307
  %v324 = vpack.c.bf16 %v308, %v308
  %v325 = vpack.c.bf16 %v309, %v309
  %v326 = vpack.c.bf16 %v310, %v310
  %v327 = vpack.c.bf16 %v311, %v311
  %v328 = vpack.c.bf16 %v312, %v312
  %v329 = vpack.c.bf16 %v313, %v313
  %v330 = vpack.c.bf16 %v314, %v314
  %v331 = vpack.c.bf16 %v315, %v315
  %v332 = vpack.c.bf16 %v316, %v316
  %v333 = vpack.c.bf16 %v317, %v317
  %v334 = vpack.c.bf16 %v318, %v318
  %v335 = vpack.c.bf16 %v319, %v319
  %v352 = vunpack.c.l.b16 %v320
  %v353 = vunpack.c.l.b16 %v321
  %v354 = vunpack.c.l.b16 %v322
  %v355 = vunpack.c.l.b16 %v323
  %v356 = vunpack.c.l.b16 %v324
  %v357 = vunpack.c.l.b16 %v325
  %v358 = vunpack.c.l.b16 %v326
  %v359 = vunpack.c.l.b16 %v327
  %v360 = vunpack.c.l.b16 %v328
  %v361 = vunpack.c.l.b16 %v329
  %v362 = vunpack.c.l.b16 %v330
  %v363 = vunpack.c.l.b16 %v331
  %v364 = vunpack.c.l.b16 %v332
  %v365 = vunpack.c.l.b16 %v333
  %v366 = vunpack.c.l.b16 %v334
  %v367 = vunpack.c.l.b16 %v335
  %v368 = vpack.c.b16 %v353, %v352
  %v369 = vpack.c.b16 %v355, %v354
  %v370 = vpack.c.b16 %v357, %v356
  %v371 = vpack.c.b16 %v359, %v358
  %v372 = vpack.c.b16 %v361, %v360
  %v373 = vpack.c.b16 %v363, %v362
  %v374 = vpack.c.b16 %v365, %v364
  %v375 = vpack.c.b16 %v367, %v366
  %376 = vrot.lane.b32.xlu0 %v159, 32
  %v377 = vpop.permute.xlu0 %376
  %378 = vrot.lane.b32.xlu0 %v160, 32
  %v379 = vpop.permute.xlu0 %378
  %380 = vrot.lane.b32.xlu0 %v161, 32
  %v381 = vpop.permute.xlu0 %380
  %382 = vrot.lane.b32.xlu0 %v162, 32
  %v383 = vpop.permute.xlu0 %382
  %384 = vrot.lane.b32.xlu0 %v163, 32
  %v385 = vpop.permute.xlu0 %384
  %386 = vrot.lane.b32.xlu0 %v164, 32
  %v387 = vpop.permute.xlu0 %386
  %388 = vrot.lane.b32.xlu0 %v165, 32
  %v389 = vpop.permute.xlu0 %388
  %390 = vrot.lane.b32.xlu0 %v166, 32
  %v391 = vpop.permute.xlu0 %390
  %vm392 = vcmask 261120
  %v395 = vsel %vm392, %v368, %v377
  %v398 = vsel %vm392, %v369, %v379
  %v401 = vsel %vm392, %v370, %v381
  %v404 = vsel %vm392, %v371, %v383
  %v407 = vsel %vm392, %v372, %v385
  %v410 = vsel %vm392, %v373, %v387
  %v413 = vsel %vm392, %v374, %v389
  %v416 = vsel %vm392, %v375, %v391
  %v417 = vld [vmem:[%s3] sm:$0xf]
  %v418 = vld [vmem:[%s3 + $0x4] sm:$0xf]
  %v419 = vld [vmem:[%s3 + $0x8] sm:$0xf]
  %v420 = vld [vmem:[%s3 + $0xc] sm:$0xf]
  %v421 = vld [vmem:[%s3 + $0x10] sm:$0xf]
  %v422 = vld [vmem:[%s3 + $0x14] sm:$0xf]
  %v423 = vld [vmem:[%s3 + $0x18] sm:$0xf]
  %v424 = vld [vmem:[%s3 + $0x1c] sm:$0xf]
  %v425 = vperm.slane %v78, 0
  %v434 = vunpack.c.l.b16 %v417
  %v435 = vunpack.c.l.b16 %v418
  %v436 = vunpack.c.l.b16 %v419
  %v437 = vunpack.c.l.b16 %v420
  %v438 = vunpack.c.l.b16 %v421
  %v439 = vunpack.c.l.b16 %v422
  %v440 = vunpack.c.l.b16 %v423
  %v441 = vunpack.c.l.b16 %v424
  %v442 = vpack.c.b16 %v435, %v434
  %v443 = vpack.c.b16 %v437, %v436
  %v444 = vpack.c.b16 %v439, %v438
  %v445 = vpack.c.b16 %v441, %v440
  %vm450 = vcmask 523264
  %v451 = vsel %vm450, %v395, 0
  %v453 = vsel %vm450, %v398, 0
  %v455 = vsel %vm450, %v401, 0
  %v457 = vsel %vm450, %v404, 0
  %v459 = vsel %vm450, %v407, 0
  %v461 = vsel %vm450, %v410, 0
  %v463 = vsel %vm450, %v413, 0
  %v465 = vsel %vm450, %v416, 0
  %467 = vmatpush.bf16.msra.mxu0 0
  %468 = vmatpush.bf16.msra.mxu0 0
  %469 = vmatpush.bf16.msra.mxu0 0
  %470 = vmatpush.bf16.msra.mxu0 0
  %471 = vmatpush.bf16.msra.mxu0 %v445
  %472 = vmatpush.bf16.msra.mxu0 %v444
  %473 = vmatpush.bf16.msra.mxu0 %v443
  %474 = vmatpush.bf16.msra.mxu0 %v442
  %475 = vmatmul.bf16.gmra.mxu0 %v451
  %v476 = vpop.f32.mrf.mxu0
  %v477 = vadd.f32 %v425, %v476
  %v478 = vpop.f32.mrf.mxu0
  %v479 = vadd.f32 %v425, %v478
  %480 = vmatmul.bf16.gmra.mxu0 %v453
  %v481 = vpop.f32.mrf.mxu0
  %v482 = vadd.f32 %v425, %v481
  %v483 = vpop.f32.mrf.mxu0
  %v484 = vadd.f32 %v425, %v483
  %485 = vmatmul.bf16.gmra.mxu0 %v455
  %v486 = vpop.f32.mrf.mxu0
  %v487 = vadd.f32 %v425, %v486
  %v488 = vpop.f32.mrf.mxu0
  %v489 = vadd.f32 %v425, %v488
  %490 = vmatmul.bf16.gmra.mxu0 %v457
  %v491 = vpop.f32.mrf.mxu0
  %v492 = vadd.f32 %v425, %v491
  %v493 = vpop.f32.mrf.mxu0
  %v494 = vadd.f32 %v425, %v493
  %495 = vmatmul.bf16.gmra.mxu0 %v459
  %v496 = vpop.f32.mrf.mxu0
  %v497 = vadd.f32 %v425, %v496
  %v498 = vpop.f32.mrf.mxu0
  %v499 = vadd.f32 %v425, %v498
  %500 = vmatmul.bf16.gmra.mxu0 %v461
  %v501 = vpop.f32.mrf.mxu0
  %v502 = vadd.f32 %v425, %v501
  %v503 = vpop.f32.mrf.mxu0
  %v504 = vadd.f32 %v425, %v503
  %505 = vmatmul.bf16.gmra.mxu0 %v463
  %v506 = vpop.f32.mrf.mxu0
  %v507 = vadd.f32 %v425, %v506
  %v508 = vpop.f32.mrf.mxu0
  %v509 = vadd.f32 %v425, %v508
  %510 = vmatmul.bf16.gmra.mxu0 %v465
  %v511 = vpop.f32.mrf.mxu0
  %v512 = vadd.f32 %v425, %v511
  %v513 = vpop.f32.mrf.mxu0
  %v514 = vadd.f32 %v425, %v513
  %515 = vdwg.mxu0
  %v516 = vmax.f32 %v477, 0.0
  %v517 = vmax.f32 %v479, 0.0
  %v518 = vmax.f32 %v482, 0.0
  %v519 = vmax.f32 %v484, 0.0
  %v520 = vmax.f32 %v487, 0.0
  %v521 = vmax.f32 %v489, 0.0
  %v522 = vmax.f32 %v492, 0.0
  %v523 = vmax.f32 %v494, 0.0
  %v524 = vmax.f32 %v497, 0.0
  %v525 = vmax.f32 %v499, 0.0
  %v526 = vmax.f32 %v502, 0.0
  %v527 = vmax.f32 %v504, 0.0
  %v528 = vmax.f32 %v507, 0.0
  %v529 = vmax.f32 %v509, 0.0
  %v530 = vmax.f32 %v512, 0.0
  %v531 = vmax.f32 %v514, 0.0
  %v532 = vpack.c.bf16 %v516, %v516
  %v533 = vpack.c.bf16 %v517, %v517
  %v534 = vpack.c.bf16 %v518, %v518
  %v535 = vpack.c.bf16 %v519, %v519
  %v536 = vpack.c.bf16 %v520, %v520
  %v537 = vpack.c.bf16 %v521, %v521
  %v538 = vpack.c.bf16 %v522, %v522
  %v539 = vpack.c.bf16 %v523, %v523
  %v540 = vpack.c.bf16 %v524, %v524
  %v541 = vpack.c.bf16 %v525, %v525
  %v542 = vpack.c.bf16 %v526, %v526
  %v543 = vpack.c.bf16 %v527, %v527
  %v544 = vpack.c.bf16 %v528, %v528
  %v545 = vpack.c.bf16 %v529, %v529
  %v546 = vpack.c.bf16 %v530, %v530
  %v547 = vpack.c.bf16 %v531, %v531
  %v564 = vunpack.c.l.b16 %v532
  %v565 = vunpack.c.l.b16 %v533
  %v566 = vunpack.c.l.b16 %v534
  %v567 = vunpack.c.l.b16 %v535
  %v568 = vunpack.c.l.b16 %v536
  %v569 = vunpack.c.l.b16 %v537
  %v570 = vunpack.c.l.b16 %v538
  %v571 = vunpack.c.l.b16 %v539
  %v572 = vunpack.c.l.b16 %v540
  %v573 = vunpack.c.l.b16 %v541
  %v574 = vunpack.c.l.b16 %v542
  %v575 = vunpack.c.l.b16 %v543
  %v576 = vunpack.c.l.b16 %v544
  %v577 = vunpack.c.l.b16 %v545
  %v578 = vunpack.c.l.b16 %v546
  %v579 = vunpack.c.l.b16 %v547
  %v580 = vpack.c.b16 %v565, %v564
  %v581 = vpack.c.b16 %v567, %v566
  %v582 = vpack.c.b16 %v569, %v568
  %v583 = vpack.c.b16 %v571, %v570
  %v584 = vpack.c.b16 %v573, %v572
  %v585 = vpack.c.b16 %v575, %v574
  %v586 = vpack.c.b16 %v577, %v576
  %v587 = vpack.c.b16 %v579, %v578
  %596 = vmatpush.bf16.msra.mxu0 %v587
  %597 = vmatpush.bf16.msra.mxu0 %v586
  %598 = vmatpush.bf16.msra.mxu0 %v585
  %599 = vmatpush.bf16.msra.mxu0 %v584
  %600 = vmatpush.bf16.msra.mxu0 %v583
  %601 = vmatpush.bf16.msra.mxu0 %v582
  %602 = vmatpush.bf16.msra.mxu0 %v581
  %603 = vmatpush.bf16.msra.mxu0 %v580
  %604 = vmatmul.bf16.gmra.mxu0 %v111
  %v605 = vpop.f32.mrf.mxu0
  %v606 = vadd.f32 0.0, %v605
  %v607 = vpop.f32.mrf.mxu0
  %v608 = vadd.f32 0.0, %v607
  %609 = vmatmul.bf16.gmra.mxu0 %v112
  %v610 = vpop.f32.mrf.mxu0
  %v611 = vadd.f32 0.0, %v610
  %v612 = vpop.f32.mrf.mxu0
  %v613 = vadd.f32 0.0, %v612
  %614 = vmatmul.bf16.gmra.mxu0 %v113
  %v615 = vpop.f32.mrf.mxu0
  %v616 = vadd.f32 0.0, %v615
  %v617 = vpop.f32.mrf.mxu0
  %v618 = vadd.f32 0.0, %v617
  %619 = vmatmul.bf16.gmra.mxu0 %v114
  %v620 = vpop.f32.mrf.mxu0
  %v621 = vadd.f32 0.0, %v620
  %v622 = vpop.f32.mrf.mxu0
  %v623 = vadd.f32 0.0, %v622
  %624 = vmatmul.bf16.gmra.mxu0 %v115
  %v625 = vpop.f32.mrf.mxu0
  %v626 = vadd.f32 0.0, %v625
  %v627 = vpop.f32.mrf.mxu0
  %v628 = vadd.f32 0.0, %v627
  %629 = vmatmul.bf16.gmra.mxu0 %v116
  %v630 = vpop.f32.mrf.mxu0
  %v631 = vadd.f32 0.0, %v630
  %v632 = vpop.f32.mrf.mxu0
  %v633 = vadd.f32 0.0, %v632
  %634 = vmatmul.bf16.gmra.mxu0 %v117
  %v635 = vpop.f32.mrf.mxu0
  %v636 = vadd.f32 0.0, %v635
  %v637 = vpop.f32.mrf.mxu0
  %v638 = vadd.f32 0.0, %v637
  %639 = vmatmul.bf16.gmra.mxu0 %v118
  %v640 = vpop.f32.mrf.mxu0
  %v641 = vadd.f32 0.0, %v640
  %v642 = vpop.f32.mrf.mxu0
  %v643 = vadd.f32 0.0, %v642
  %644 = vdwg.mxu0
  %v645 = vmul.f32 %v606, %v227
  %v646 = vmul.f32 %v608, %v232
  %v647 = vmul.f32 %v611, %v237
  %v648 = vmul.f32 %v613, %v242
  %v649 = vmul.f32 %v616, %v247
  %v650 = vmul.f32 %v618, %v252
  %v651 = vmul.f32 %v621, %v257
  %v652 = vmul.f32 %v623, %v262
  %v653 = vmul.f32 %v626, %v267
  %v654 = vmul.f32 %v628, %v272
  %v655 = vmul.f32 %v631, %v277
  %v656 = vmul.f32 %v633, %v282
  %v657 = vmul.f32 %v636, %v287
  %v658 = vmul.f32 %v638, %v292
  %v659 = vmul.f32 %v641, %v297
  %v660 = vmul.f32 %v643, %v302
  %v661 = vpack.c.bf16 %v645, %v645
  %v662 = vpack.c.bf16 %v646, %v646
  %v663 = vpack.c.bf16 %v647, %v647
  %v664 = vpack.c.bf16 %v648, %v648
  %v665 = vpack.c.bf16 %v649, %v649
  %v666 = vpack.c.bf16 %v650, %v650
  %v667 = vpack.c.bf16 %v651, %v651
  %v668 = vpack.c.bf16 %v652, %v652
  %v669 = vpack.c.bf16 %v653, %v653
  %v670 = vpack.c.bf16 %v654, %v654
  %v671 = vpack.c.bf16 %v655, %v655
  %v672 = vpack.c.bf16 %v656, %v656
  %v673 = vpack.c.bf16 %v657, %v657
  %v674 = vpack.c.bf16 %v658, %v658
  %v675 = vpack.c.bf16 %v659, %v659
  %v676 = vpack.c.bf16 %v660, %v660
  %v693 = vunpack.c.l.b16 %v661
  %v694 = vunpack.c.l.b16 %v662
  %v695 = vunpack.c.l.b16 %v663
  %v696 = vunpack.c.l.b16 %v664
  %v697 = vunpack.c.l.b16 %v665
  %v698 = vunpack.c.l.b16 %v666
  %v699 = vunpack.c.l.b16 %v667
  %v700 = vunpack.c.l.b16 %v668
  %v701 = vunpack.c.l.b16 %v669
  %v702 = vunpack.c.l.b16 %v670
  %v703 = vunpack.c.l.b16 %v671
  %v704 = vunpack.c.l.b16 %v672
  %v705 = vunpack.c.l.b16 %v673
  %v706 = vunpack.c.l.b16 %v674
  %v707 = vunpack.c.l.b16 %v675
  %v708 = vunpack.c.l.b16 %v676
  %v709 = vpack.c.b16 %v694, %v693
  %v710 = vpack.c.b16 %v696, %v695
  %v711 = vpack.c.b16 %v698, %v697
  %v712 = vpack.c.b16 %v700, %v699
  %v713 = vpack.c.b16 %v702, %v701
  %v714 = vpack.c.b16 %v704, %v703
  %v715 = vpack.c.b16 %v706, %v705
  %v716 = vpack.c.b16 %v708, %v707
  %717 = vrot.lane.b32.xlu0 %v580, 64
  %v718 = vpop.permute.xlu0 %717
  %719 = vrot.lane.b32.xlu0 %v581, 64
  %v720 = vpop.permute.xlu0 %719
  %721 = vrot.lane.b32.xlu0 %v582, 64
  %v722 = vpop.permute.xlu0 %721
  %723 = vrot.lane.b32.xlu0 %v583, 64
  %v724 = vpop.permute.xlu0 %723
  %725 = vrot.lane.b32.xlu0 %v584, 64
  %v726 = vpop.permute.xlu0 %725
  %727 = vrot.lane.b32.xlu0 %v585, 64
  %v728 = vpop.permute.xlu0 %727
  %729 = vrot.lane.b32.xlu0 %v586, 64
  %v730 = vpop.permute.xlu0 %729
  %731 = vrot.lane.b32.xlu0 %v587, 64
  %v732 = vpop.permute.xlu0 %731
  %v735 = vsel %vm450, %v709, %v718
  %v739 = vsel %vm450, %v710, %v720
  %v743 = vsel %vm450, %v711, %v722
  %v747 = vsel %vm450, %v712, %v724
  %v751 = vsel %vm450, %v713, %v726
  %v755 = vsel %vm450, %v714, %v728
  %v759 = vsel %vm450, %v715, %v730
  %v763 = vsel %vm450, %v716, %v732
  %v765 = vld [vmem:[%s4] sm:$0xf]
  %v766 = vld [vmem:[%s4 + $0x4] sm:$0xf]
  %v767 = vld [vmem:[%s4 + $0x8] sm:$0xf]
  %v768 = vld [vmem:[%s4 + $0xc] sm:$0xf]
  %v769 = vld [vmem:[%s4 + $0x10] sm:$0xf]
  %v770 = vld [vmem:[%s4 + $0x14] sm:$0xf]
  %v771 = vld [vmem:[%s4 + $0x18] sm:$0xf]
  %v772 = vld [vmem:[%s4 + $0x1c] sm:$0xf]
  %v773 = vld [vmem:[%s4 + $0x20] sm:$0xf]
  %v774 = vld [vmem:[%s4 + $0x24] sm:$0xf]
  %v775 = vld [vmem:[%s4 + $0x28] sm:$0xf]
  %v776 = vld [vmem:[%s4 + $0x2c] sm:$0xf]
  %v777 = vld [vmem:[%s4 + $0x30] sm:$0xf]
  %v778 = vld [vmem:[%s4 + $0x34] sm:$0xf]
  %v779 = vld [vmem:[%s4 + $0x38] sm:$0xf]
  %v780 = vld [vmem:[%s4 + $0x3c] sm:$0xf]
  %v781 = vperm.slane %v78, 1
  %v798 = vunpack.c.l.b16 %v765
  %v799 = vunpack.c.l.b16 %v766
  %v800 = vunpack.c.l.b16 %v767
  %v801 = vunpack.c.l.b16 %v768
  %v802 = vunpack.c.l.b16 %v769
  %v803 = vunpack.c.l.b16 %v770
  %v804 = vunpack.c.l.b16 %v771
  %v805 = vunpack.c.l.b16 %v772
  %v806 = vunpack.c.l.b16 %v773
  %v807 = vunpack.c.l.b16 %v774
  %v808 = vunpack.c.l.b16 %v775
  %v809 = vunpack.c.l.b16 %v776
  %v810 = vunpack.c.l.b16 %v777
  %v811 = vunpack.c.l.b16 %v778
  %v812 = vunpack.c.l.b16 %v779
  %v813 = vunpack.c.l.b16 %v780
  %v814 = vpack.c.b16 %v799, %v798
  %v815 = vpack.c.b16 %v801, %v800
  %v816 = vpack.c.b16 %v803, %v802
  %v817 = vpack.c.b16 %v805, %v804
  %v818 = vpack.c.b16 %v807, %v806
  %v819 = vpack.c.b16 %v809, %v808
  %v820 = vpack.c.b16 %v811, %v810
  %v821 = vpack.c.b16 %v813, %v812
  %830 = vmatpush.bf16.msra.mxu0 %v821
  %831 = vmatpush.bf16.msra.mxu0 %v820
  %832 = vmatpush.bf16.msra.mxu0 %v819
  %833 = vmatpush.bf16.msra.mxu0 %v818
  %834 = vmatpush.bf16.msra.mxu0 %v817
  %835 = vmatpush.bf16.msra.mxu0 %v816
  %836 = vmatpush.bf16.msra.mxu0 %v815
  %837 = vmatpush.bf16.msra.mxu0 %v814
  %838 = vmatmul.bf16.gmra.mxu0 %v735
  %v839 = vpop.f32.mrf.mxu0
  %v840 = vadd.f32 %v781, %v839
  %v841 = vpop.f32.mrf.mxu0
  %v842 = vadd.f32 %v781, %v841
  %843 = vmatmul.bf16.gmra.mxu0 %v739
  %v844 = vpop.f32.mrf.mxu0
  %v845 = vadd.f32 %v781, %v844
  %v846 = vpop.f32.mrf.mxu0
  %v847 = vadd.f32 %v781, %v846
  %848 = vmatmul.bf16.gmra.mxu0 %v743
  %v849 = vpop.f32.mrf.mxu0
  %v850 = vadd.f32 %v781, %v849
  %v851 = vpop.f32.mrf.mxu0
  %v852 = vadd.f32 %v781, %v851
  %853 = vmatmul.bf16.gmra.mxu0 %v747
  %v854 = vpop.f32.mrf.mxu0
  %v855 = vadd.f32 %v781, %v854
  %v856 = vpop.f32.mrf.mxu0
  %v857 = vadd.f32 %v781, %v856
  %858 = vmatmul.bf16.gmra.mxu0 %v751
  %v859 = vpop.f32.mrf.mxu0
  %v860 = vadd.f32 %v781, %v859
  %v861 = vpop.f32.mrf.mxu0
  %v862 = vadd.f32 %v781, %v861
  %863 = vmatmul.bf16.gmra.mxu0 %v755
  %v864 = vpop.f32.mrf.mxu0
  %v865 = vadd.f32 %v781, %v864
  %v866 = vpop.f32.mrf.mxu0
  %v867 = vadd.f32 %v781, %v866
  %868 = vmatmul.bf16.gmra.mxu0 %v759
  %v869 = vpop.f32.mrf.mxu0
  %v870 = vadd.f32 %v781, %v869
  %v871 = vpop.f32.mrf.mxu0
  %v872 = vadd.f32 %v781, %v871
  %873 = vmatmul.bf16.gmra.mxu0 %v763
  %v874 = vpop.f32.mrf.mxu0
  %v875 = vadd.f32 %v781, %v874
  %v876 = vpop.f32.mrf.mxu0
  %v877 = vadd.f32 %v781, %v876
  %878 = vdwg.mxu0
  %v879 = vpack.c.bf16 %v842, %v840
  %v880 = vpack.c.bf16 %v847, %v845
  %v881 = vpack.c.bf16 %v852, %v850
  %v882 = vpack.c.bf16 %v857, %v855
  %v883 = vpack.c.bf16 %v862, %v860
  %v884 = vpack.c.bf16 %v867, %v865
  %v885 = vpack.c.bf16 %v872, %v870
  %v886 = vpack.c.bf16 %v877, %v875
  %v887 = vld [vmem:[%s5] sm:$0xf]
  %v888 = vld [vmem:[%s5 + $0x4] sm:$0xf]
  %v889 = vld [vmem:[%s5 + $0x8] sm:$0xf]
  %v890 = vld [vmem:[%s5 + $0xc] sm:$0xf]
  %v891 = vld [vmem:[%s5 + $0x10] sm:$0xf]
  %v892 = vld [vmem:[%s5 + $0x14] sm:$0xf]
  %v893 = vld [vmem:[%s5 + $0x18] sm:$0xf]
  %v894 = vld [vmem:[%s5 + $0x1c] sm:$0xf]
  %v895 = vperm.slane %v78, 2
  %v904 = vunpack.c.l.b16 %v887
  %v905 = vunpack.c.l.b16 %v888
  %v906 = vunpack.c.l.b16 %v889
  %v907 = vunpack.c.l.b16 %v890
  %v908 = vunpack.c.l.b16 %v891
  %v909 = vunpack.c.l.b16 %v892
  %v910 = vunpack.c.l.b16 %v893
  %v911 = vunpack.c.l.b16 %v894
  %v912 = vpack.c.b16 %v905, %v904
  %v913 = vpack.c.b16 %v907, %v906
  %v914 = vpack.c.b16 %v909, %v908
  %v915 = vpack.c.b16 %v911, %v910
  %v921 = vsel %vm450, %v879, 0
  %v924 = vsel %vm450, %v880, 0
  %v927 = vsel %vm450, %v881, 0
  %v930 = vsel %vm450, %v882, 0
  %v933 = vsel %vm450, %v883, 0
  %v936 = vsel %vm450, %v884, 0
  %v939 = vsel %vm450, %v885, 0
  %v942 = vsel %vm450, %v886, 0
  %944 = vmatpush.bf16.msra.mxu0 0
  %945 = vmatpush.bf16.msra.mxu0 0
  %946 = vmatpush.bf16.msra.mxu0 0
  %947 = vmatpush.bf16.msra.mxu0 0
  %948 = vmatpush.bf16.msra.mxu0 %v915
  %949 = vmatpush.bf16.msra.mxu0 %v914
  %950 = vmatpush.bf16.msra.mxu0 %v913
  %951 = vmatpush.bf16.msra.mxu0 %v912
  %952 = vmatmul.bf16.gmra.mxu0 %v921
  %v953 = vpop.f32.mrf.mxu0
  %v954 = vadd.f32 %v895, %v953
  %v955 = vpop.f32.mrf.mxu0
  %v956 = vadd.f32 %v895, %v955
  %957 = vmatmul.bf16.gmra.mxu0 %v924
  %v958 = vpop.f32.mrf.mxu0
  %v959 = vadd.f32 %v895, %v958
  %v960 = vpop.f32.mrf.mxu0
  %v961 = vadd.f32 %v895, %v960
  %962 = vmatmul.bf16.gmra.mxu0 %v927
  %v963 = vpop.f32.mrf.mxu0
  %v964 = vadd.f32 %v895, %v963
  %v965 = vpop.f32.mrf.mxu0
  %v966 = vadd.f32 %v895, %v965
  %967 = vmatmul.bf16.gmra.mxu0 %v930
  %v968 = vpop.f32.mrf.mxu0
  %v969 = vadd.f32 %v895, %v968
  %v970 = vpop.f32.mrf.mxu0
  %v971 = vadd.f32 %v895, %v970
  %972 = vmatmul.bf16.gmra.mxu0 %v933
  %v973 = vpop.f32.mrf.mxu0
  %v974 = vadd.f32 %v895, %v973
  %v975 = vpop.f32.mrf.mxu0
  %v976 = vadd.f32 %v895, %v975
  %977 = vmatmul.bf16.gmra.mxu0 %v936
  %v978 = vpop.f32.mrf.mxu0
  %v979 = vadd.f32 %v895, %v978
  %v980 = vpop.f32.mrf.mxu0
  %v981 = vadd.f32 %v895, %v980
  %982 = vmatmul.bf16.gmra.mxu0 %v939
  %v983 = vpop.f32.mrf.mxu0
  %v984 = vadd.f32 %v895, %v983
  %v985 = vpop.f32.mrf.mxu0
  %v986 = vadd.f32 %v895, %v985
  %987 = vmatmul.bf16.gmra.mxu0 %v942
  %v988 = vpop.f32.mrf.mxu0
  %v989 = vadd.f32 %v895, %v988
  %v990 = vpop.f32.mrf.mxu0
  %v991 = vadd.f32 %v895, %v990
  %992 = vdwg.mxu0
  %v993 = vmax.f32 %v954, 0.0
  %v994 = vmax.f32 %v956, 0.0
  %v995 = vmax.f32 %v959, 0.0
  %v996 = vmax.f32 %v961, 0.0
  %v997 = vmax.f32 %v964, 0.0
  %v998 = vmax.f32 %v966, 0.0
  %v999 = vmax.f32 %v969, 0.0
  %v1000 = vmax.f32 %v971, 0.0
  %v1001 = vmax.f32 %v974, 0.0
  %v1002 = vmax.f32 %v976, 0.0
  %v1003 = vmax.f32 %v979, 0.0
  %v1004 = vmax.f32 %v981, 0.0
  %v1005 = vmax.f32 %v984, 0.0
  %v1006 = vmax.f32 %v986, 0.0
  %v1007 = vmax.f32 %v989, 0.0
  %v1008 = vmax.f32 %v991, 0.0
  %v1009 = vpack.c.bf16 %v994, %v993
  %v1010 = vpack.c.bf16 %v996, %v995
  %v1011 = vpack.c.bf16 %v998, %v997
  %v1012 = vpack.c.bf16 %v1000, %v999
  %v1013 = vpack.c.bf16 %v1002, %v1001
  %v1014 = vpack.c.bf16 %v1004, %v1003
  %v1015 = vpack.c.bf16 %v1006, %v1005
  %v1016 = vpack.c.bf16 %v1008, %v1007
  %v1017 = vld [vmem:[%s6] sm:$0xf]
  %v1018 = vld [vmem:[%s6 + $0x4] sm:$0xf]
  %v1019 = vld [vmem:[%s6 + $0x8] sm:$0xf]
  %v1020 = vld [vmem:[%s6 + $0xc] sm:$0xf]
  %v1021 = vld [vmem:[%s6 + $0x10] sm:$0xf]
  %v1022 = vld [vmem:[%s6 + $0x14] sm:$0xf]
  %v1023 = vld [vmem:[%s6 + $0x18] sm:$0xf]
  %v1024 = vld [vmem:[%s6 + $0x1c] sm:$0xf]
  %v1025 = vperm.slane %v78, 3
  %v1034 = vunpack.c.l.b16 %v1017
  %v1035 = vunpack.c.l.b16 %v1018
  %v1036 = vunpack.c.l.b16 %v1019
  %v1037 = vunpack.c.l.b16 %v1020
  %v1038 = vunpack.c.l.b16 %v1021
  %v1039 = vunpack.c.l.b16 %v1022
  %v1040 = vunpack.c.l.b16 %v1023
  %v1041 = vunpack.c.l.b16 %v1024
  %v1042 = vpack.c.b16 %v1035, %v1034
  %v1043 = vpack.c.b16 %v1037, %v1036
  %v1044 = vpack.c.b16 %v1039, %v1038
  %v1045 = vpack.c.b16 %v1041, %v1040
  %v1051 = vsel %vm450, %v1009, 0
  %v1054 = vsel %vm450, %v1010, 0
  %v1057 = vsel %vm450, %v1011, 0
  %v1060 = vsel %vm450, %v1012, 0
  %v1063 = vsel %vm450, %v1013, 0
  %v1066 = vsel %vm450, %v1014, 0
  %v1069 = vsel %vm450, %v1015, 0
  %v1072 = vsel %vm450, %v1016, 0
  %1074 = vmatpush.bf16.msra.mxu0 0
  %1075 = vmatpush.bf16.msra.mxu0 0
  %1076 = vmatpush.bf16.msra.mxu0 0
  %1077 = vmatpush.bf16.msra.mxu0 0
  %1078 = vmatpush.bf16.msra.mxu0 %v1045
  %1079 = vmatpush.bf16.msra.mxu0 %v1044
  %1080 = vmatpush.bf16.msra.mxu0 %v1043
  %1081 = vmatpush.bf16.msra.mxu0 %v1042
  %1082 = vmatmul.bf16.gmra.mxu0 %v1051
  %v1083 = vpop.f32.mrf.mxu0
  %v1084 = vadd.f32 %v1025, %v1083
  %v1085 = vpop.f32.mrf.mxu0
  %v1086 = vadd.f32 %v1025, %v1085
  %1087 = vmatmul.bf16.gmra.mxu0 %v1054
  %v1088 = vpop.f32.mrf.mxu0
  %v1089 = vadd.f32 %v1025, %v1088
  %v1090 = vpop.f32.mrf.mxu0
  %v1091 = vadd.f32 %v1025, %v1090
  %1092 = vmatmul.bf16.gmra.mxu0 %v1057
  %v1093 = vpop.f32.mrf.mxu0
  %v1094 = vadd.f32 %v1025, %v1093
  %v1095 = vpop.f32.mrf.mxu0
  %v1096 = vadd.f32 %v1025, %v1095
  %1097 = vmatmul.bf16.gmra.mxu0 %v1060
  %v1098 = vpop.f32.mrf.mxu0
  %v1099 = vadd.f32 %v1025, %v1098
  %v1100 = vpop.f32.mrf.mxu0
  %v1101 = vadd.f32 %v1025, %v1100
  %1102 = vmatmul.bf16.gmra.mxu0 %v1063
  %v1103 = vpop.f32.mrf.mxu0
  %v1104 = vadd.f32 %v1025, %v1103
  %v1105 = vpop.f32.mrf.mxu0
  %v1106 = vadd.f32 %v1025, %v1105
  %1107 = vmatmul.bf16.gmra.mxu0 %v1066
  %v1108 = vpop.f32.mrf.mxu0
  %v1109 = vadd.f32 %v1025, %v1108
  %v1110 = vpop.f32.mrf.mxu0
  %v1111 = vadd.f32 %v1025, %v1110
  %1112 = vmatmul.bf16.gmra.mxu0 %v1069
  %v1113 = vpop.f32.mrf.mxu0
  %v1114 = vadd.f32 %v1025, %v1113
  %v1115 = vpop.f32.mrf.mxu0
  %v1116 = vadd.f32 %v1025, %v1115
  %1117 = vmatmul.bf16.gmra.mxu0 %v1072
  %v1118 = vpop.f32.mrf.mxu0
  %v1119 = vadd.f32 %v1025, %v1118
  %v1120 = vpop.f32.mrf.mxu0
  %v1121 = vadd.f32 %v1025, %v1120
  %1122 = vdwg.mxu0
  %v1123 = vmax.f32 %v1084, 0.0
  %v1124 = vmax.f32 %v1086, 0.0
  %v1125 = vmax.f32 %v1089, 0.0
  %v1126 = vmax.f32 %v1091, 0.0
  %v1127 = vmax.f32 %v1094, 0.0
  %v1128 = vmax.f32 %v1096, 0.0
  %v1129 = vmax.f32 %v1099, 0.0
  %v1130 = vmax.f32 %v1101, 0.0
  %v1131 = vmax.f32 %v1104, 0.0
  %v1132 = vmax.f32 %v1106, 0.0
  %v1133 = vmax.f32 %v1109, 0.0
  %v1134 = vmax.f32 %v1111, 0.0
  %v1135 = vmax.f32 %v1114, 0.0
  %v1136 = vmax.f32 %v1116, 0.0
  %v1137 = vmax.f32 %v1119, 0.0
  %v1138 = vmax.f32 %v1121, 0.0
  %v1139 = vpack.c.bf16 %v1123, %v1123
  %v1140 = vpack.c.bf16 %v1124, %v1124
  %v1141 = vpack.c.bf16 %v1125, %v1125
  %v1142 = vpack.c.bf16 %v1126, %v1126
  %v1143 = vpack.c.bf16 %v1127, %v1127
  %v1144 = vpack.c.bf16 %v1128, %v1128
  %v1145 = vpack.c.bf16 %v1129, %v1129
  %v1146 = vpack.c.bf16 %v1130, %v1130
  %v1147 = vpack.c.bf16 %v1131, %v1131
  %v1148 = vpack.c.bf16 %v1132, %v1132
  %v1149 = vpack.c.bf16 %v1133, %v1133
  %v1150 = vpack.c.bf16 %v1134, %v1134
  %v1151 = vpack.c.bf16 %v1135, %v1135
  %v1152 = vpack.c.bf16 %v1136, %v1136
  %v1153 = vpack.c.bf16 %v1137, %v1137
  %v1154 = vpack.c.bf16 %v1138, %v1138
  %1155 = vst [vmem:[%s8] sm:$0xf] %v1139
  %1156 = vst [vmem:[%s8 + $0x4] sm:$0xf] %v1140
  %1157 = vst [vmem:[%s8 + $0x8] sm:$0xf] %v1141
  %1158 = vst [vmem:[%s8 + $0xc] sm:$0xf] %v1142
  %1159 = vst [vmem:[%s8 + $0x10] sm:$0xf] %v1143
  %1160 = vst [vmem:[%s8 + $0x14] sm:$0xf] %v1144
  %1161 = vst [vmem:[%s8 + $0x18] sm:$0xf] %v1145
  %1162 = vst [vmem:[%s8 + $0x1c] sm:$0xf] %v1146
  %1163 = vst [vmem:[%s8 + $0x20] sm:$0xf] %v1147
  %1164 = vst [vmem:[%s8 + $0x24] sm:$0xf] %v1148
  %1165 = vst [vmem:[%s8 + $0x28] sm:$0xf] %v1149
  %1166 = vst [vmem:[%s8 + $0x2c] sm:$0xf] %v1150
  %1167 = vst [vmem:[%s8 + $0x30] sm:$0xf] %v1151
  %1168 = vst [vmem:[%s8 + $0x34] sm:$0xf] %v1152
  %1169 = vst [vmem:[%s8 + $0x38] sm:$0xf] %v1153
  %1170 = vst [vmem:[%s8 + $0x3c] sm:$0xf] %v1154
  // Predicated region
  $region34: #{gsage_forward.1} parent=0 // pred_check
    _
  $region35: #{gsage_forward.1} parent=0 // pred_check_branch
    %1172 = sbr.rel (0) target = $region37
  $region36: #{gsage_forward.1} parent=0 // pred_region
    _
  $region37: #{gsage_forward.1} parent=0 // pred_fallthru
    _
  // Predicated region
  $region38: #{gsage_forward.1} parent=0 // pred_check
    _
  $region39: #{gsage_forward.1} parent=0 // pred_check_branch
    %1174 = sbr.rel (0) target = $region41
  $region40: #{gsage_forward.1} parent=0 // pred_region
    _
  $region41: #{gsage_forward.1} parent=0 // pred_fallthru
    _

</llo_original>
